<compile_context>
chip_gen: v5e
topology: v5e:2x2
jax: 0.10.0
libtpu: 0.0.40
codegen_flags: <defaults>
</compile_context>

<pallas_src>
import numpy as np
import jax
import jax.numpy as jnp
from jax.experimental import pallas as pl
from jax.experimental.pallas import tpu as pltpu

IN_WINDOW = 12            # in_window * input_dim
H1, H2, H3 = 32, 64, 32   # fc1 / fc2 / fc3 output dims
NUM_ENC = 3               # residual MLP encoder blocks
PRE_WINDOW = 12           # regression output dim

LANE = 128                # TPU lane width
MIN_TILE = 1024           # never split into tiles narrower than this
TILE_N_MAX = 8192         # max columns per grid step


def _round_up(a, b):
    return -(-a // b) * b


# ---------------- static packed-parameter layout ----------------
# (fan_in, fan_out) per Linear layer, in execution order.
_LAYER_DIMS = (
    (IN_WINDOW, H1),            # fc1
    (H1, H2),                   # fc2
    (H2, H3),                   # fc3
    (H3, H3), (H3, H3),         # encoder[0].fc1 / fc2
    (H3, H3), (H3, H3),         # encoder[1].fc1 / fc2
    (H3, H3), (H3, H3),         # encoder[2].fc1 / fc2
    (H3, PRE_WINDOW),           # regression_layer
)
_ROW_OFF = []
_r = 0
for _fi, _fo in _LAYER_DIMS:
    _ROW_OFF.append(_r)
    _r += _fo
BIAS_COL = 64                        # == max fan-in; bias stored in this column
PACK_ROWS = _round_up(_r, 16)        # 336: bf16 sublane-tile aligned
PACK_COLS = 128                      # lane-tile aligned slab width


# ---------------- shared network math (kernel + reference) ----------------
def _layer(wp, h, idx, relu):
    """One Linear (+ optional ReLU). `wp` is the packed slab (Ref or array)."""
    n_in, n_out = _LAYER_DIMS[idx]
    r0 = _ROW_OFF[idx]
    w = wp[r0:r0 + n_out, 0:n_in]                       # (out, in)  bf16
    b = wp[r0:r0 + n_out, BIAS_COL:BIAS_COL + 1]        # (out, 1)   bf16
    y = jnp.dot(w, h, preferred_element_type=jnp.float32) + b
    if relu:
        y = jnp.maximum(y, 0.0)
    return y                                            # f32 (out, T)


def _network(x, wp):
    """x: (12, T) bf16 feature-major slab; wp: packed params. Returns f32 (12, T)."""
    h = _layer(wp, x, 0, True).astype(jnp.bfloat16)     # fc1 + ReLU
    h = _layer(wp, h, 1, True).astype(jnp.bfloat16)     # fc2 + ReLU (drop p=0)
    h = _layer(wp, h, 2, True).astype(jnp.bfloat16)     # fc3 + ReLU
    for l in range(NUM_ENC):                            # residual MLP blocks
        t = _layer(wp, h, 3 + 2 * l, True).astype(jnp.bfloat16)
        t = _layer(wp, t, 4 + 2 * l, False)             # f32
        h = (t + h).astype(jnp.bfloat16)                # out = fc2(relu(fc1(h))) + h
    return _layer(wp, h, 9, False)                      # regression head, f32


def _ts3d_kernel(x_ref, wp_ref, o_ref):
    o_ref[...] = _network(x_ref[...], wp_ref).astype(o_ref.dtype)


# ---------------- tiling ----------------
def _choose_tile_n(m):
    """Lane-aligned tile width: >=2 balanced steps of >=MIN_TILE when possible
    (v7x megacore), capped at TILE_N_MAX, padding bounded by the 128 round-up."""
    m_pad = _round_up(max(m, 1), LANE)
    if m_pad < 2 * MIN_TILE:
        return m_pad                       # single tile; splitting would starve MXU
    steps = 2
    while _round_up(pl.cdiv(m, steps), LANE) > TILE_N_MAX:
        steps += 2
    return _round_up(pl.cdiv(m, steps), LANE)


# ---------------- wrappers ----------------
def ts3d_forward_feature_major(xt, wpack):
    """Preferred entry point (skips relayout): xt (IN_WINDOW, M) -> (PRE_WINDOW, M) f32."""
    f, m = xt.shape
    assert f == IN_WINDOW
    tile_n = _choose_tile_n(m)
    mp = _round_up(m, tile_n)

    xb = xt.astype(jnp.bfloat16)
    if mp != m:
        xb = jnp.pad(xb, ((0, 0), (0, mp - m)))

    out = pl.pallas_call(
        _ts3d_kernel,
        out_shape=jax.ShapeDtypeStruct((PRE_WINDOW, mp), jnp.float32),
        grid_spec=pltpu.PrefetchScalarGridSpec(
            num_scalar_prefetch=0,
            grid=(mp // tile_n,),
            in_specs=[
                pl.BlockSpec((IN_WINDOW, tile_n), lambda i: (0, i)),
                pl.BlockSpec((PACK_ROWS, PACK_COLS), lambda i: (0, 0)),  # resident
            ],
            out_specs=pl.BlockSpec((PRE_WINDOW, tile_n), lambda i: (0, i)),
        ),
        compiler_params=pltpu.CompilerParams(
            dimension_semantics=("parallel",)),
    )(xb, wpack)
    return out[:, :m]


@jax.jit
def ts3d_forward(x, wpack):
    """Row-major API matching the torch module: (B, N, 12) -> (B, N, 12) f32."""
    b, n, f = x.shape
    m = b * n
    xt = x.reshape(m, f).T                       # relayout fused under jit
    out_t = ts3d_forward_feature_major(xt, wpack)
    return out_t.T.reshape(b, n, PRE_WINDOW)


# ---------------- parameter init / packing ----------------
def init_params(key):
    """Torch nn.Linear default init U[-1/sqrt(fan_in), 1/sqrt(fan_in)], packed into
    one (PACK_ROWS, PACK_COLS) bf16 slab: cols 0:fan_in = W (out, in), col 64 = bias."""
    keys = jax.random.split(key, len(_LAYER_DIMS))
    wpack = np.zeros((PACK_ROWS, PACK_COLS), np.float32)
    for idx, ((n_in, n_out), k) in enumerate(zip(_LAYER_DIMS, keys)):
        kw, kb = jax.random.split(k)
        bound = 1.0 / float(np.sqrt(n_in))
        w = jax.random.uniform(kw, (n_out, n_in), jnp.float32, -bound, bound)
        b = jax.random.uniform(kb, (n_out,), jnp.float32, -bound, bound)
        r0 = _ROW_OFF[idx]
        wpack[r0:r0 + n_out, :n_in] = np.asarray(w)
        wpack[r0:r0 + n_out, BIAS_COL] = np.asarray(b)
    return jnp.asarray(wpack, dtype=jnp.bfloat16)


if __name__ == "__main__":
    key = jax.random.PRNGKey(0)
    k_params, k_x = jax.random.split(key)

    wpack = init_params(k_params)

    # Small shapes consistent with the module: batch=2, nodes=8 (stand-in for
    # 5086), in_window * input_dim = 12.
    B, N = 2, 8
    x = jax.random.normal(k_x, (B, N, IN_WINDOW), dtype=jnp.float32)

    out = ts3d_forward(x, wpack)
    out = jax.block_until_ready(out)
    assert out.shape == (B, N, PRE_WINDOW), out.shape
    assert bool(jnp.all(jnp.isfinite(out)))

    # Pure-JAX reference using the exact same math/dtypes as the kernel.
    xt_ref = x.reshape(B * N, IN_WINDOW).T.astype(jnp.bfloat16)
    ref = _network(xt_ref, wpack).T.reshape(B, N, PRE_WINDOW)
    assert jnp.allclose(out, ref, rtol=2e-2, atol=2e-2), \
        float(jnp.max(jnp.abs(out - ref)))

    print("KERNEL_OK")
</pallas_src>

<mosaic_0001>
module attributes {stable_mosaic.version = 11 : i64} {
  func.func @_ts3d_kernel(%arg0: i32, %arg1: memref<12x128xbf16, #tpu.memory_space<vmem>>, %arg2: memref<336x128xbf16, #tpu.memory_space<vmem>>, %arg3: memref<12x128xf32, #tpu.memory_space<vmem>>) attributes {dimension_semantics = [#tpu.dimension_semantics<parallel>], iteration_bounds = array<i64: 1>, scalar_prefetch = 0 : i64, scratch_operands = 0 : i64, tpu.core_type = #tpu.core_type<tc>, window_params = [{transform_indices = @transform_0, window_bounds = array<i64: 12, 128>}, {pipeline_mode = #tpu.pipeline_mode<synchronous>, transform_indices = @transform_1, window_bounds = array<i64: 336, 128>}, {transform_indices = @transform_2, window_bounds = array<i64: 12, 128>}]} {
    %c0 = arith.constant 0 : index
    %c0_0 = arith.constant 0 : index
    %0 = vector.load %arg1[%c0, %c0_0] : memref<12x128xbf16, #tpu.memory_space<vmem>>, vector<12x128xbf16>
    %c0_1 = arith.constant 0 : index
    %c0_2 = arith.constant 0 : index
    %1 = vector.load %arg2[%c0_1, %c0_2] : memref<336x128xbf16, #tpu.memory_space<vmem>>, vector<32x12xbf16>
    %c0_3 = arith.constant 0 : index
    %c64 = arith.constant 64 : index
    %2 = vector.load %arg2[%c0_3, %c64] : memref<336x128xbf16, #tpu.memory_space<vmem>>, vector<32x1xbf16>
    %cst = arith.constant dense<0.000000e+00> : vector<32x128xf32>
    %3 = tpu.matmul %1, %0, %cst {dimension_numbers = #tpu.dot_dimension_numbers<[1], [0], [0], [1], [0, 0, 1, 1], [], []>} : vector<32x12xbf16>, vector<12x128xbf16>, vector<32x128xf32> -> vector<32x128xf32>
    %4 = arith.extf %2 : vector<32x1xbf16> to vector<32x1xf32>
    %5 = vector.broadcast %4 : vector<32x1xf32> to vector<32x128xf32>
    %6 = arith.addf %3, %5 : vector<32x128xf32>
    %cst_4 = arith.constant 0.000000e+00 : f32
    %7 = vector.broadcast %cst_4 : f32 to vector<32x128xf32>
    %8 = arith.maximumf %6, %7 : vector<32x128xf32>
    %9 = arith.truncf %8 : vector<32x128xf32> to vector<32x128xbf16>
    %c32 = arith.constant 32 : index
    %c0_5 = arith.constant 0 : index
    %10 = vector.load %arg2[%c32, %c0_5] : memref<336x128xbf16, #tpu.memory_space<vmem>>, vector<64x32xbf16>
    %c32_6 = arith.constant 32 : index
    %c64_7 = arith.constant 64 : index
    %11 = vector.load %arg2[%c32_6, %c64_7] : memref<336x128xbf16, #tpu.memory_space<vmem>>, vector<64x1xbf16>
    %cst_8 = arith.constant dense<0.000000e+00> : vector<64x128xf32>
    %12 = tpu.matmul %10, %9, %cst_8 {dimension_numbers = #tpu.dot_dimension_numbers<[1], [0], [0], [1], [0, 0, 1, 1], [], []>} : vector<64x32xbf16>, vector<32x128xbf16>, vector<64x128xf32> -> vector<64x128xf32>
    %13 = arith.extf %11 : vector<64x1xbf16> to vector<64x1xf32>
    %14 = vector.broadcast %13 : vector<64x1xf32> to vector<64x128xf32>
    %15 = arith.addf %12, %14 : vector<64x128xf32>
    %cst_9 = arith.constant 0.000000e+00 : f32
    %16 = vector.broadcast %cst_9 : f32 to vector<64x128xf32>
    %17 = arith.maximumf %15, %16 : vector<64x128xf32>
    %18 = arith.truncf %17 : vector<64x128xf32> to vector<64x128xbf16>
    %c96 = arith.constant 96 : index
    %c0_10 = arith.constant 0 : index
    %19 = vector.load %arg2[%c96, %c0_10] : memref<336x128xbf16, #tpu.memory_space<vmem>>, vector<32x64xbf16>
    %c96_11 = arith.constant 96 : index
    %c64_12 = arith.constant 64 : index
    %20 = vector.load %arg2[%c96_11, %c64_12] : memref<336x128xbf16, #tpu.memory_space<vmem>>, vector<32x1xbf16>
    %cst_13 = arith.constant dense<0.000000e+00> : vector<32x128xf32>
    %21 = tpu.matmul %19, %18, %cst_13 {dimension_numbers = #tpu.dot_dimension_numbers<[1], [0], [0], [1], [0, 0, 1, 1], [], []>} : vector<32x64xbf16>, vector<64x128xbf16>, vector<32x128xf32> -> vector<32x128xf32>
    %22 = arith.extf %20 : vector<32x1xbf16> to vector<32x1xf32>
    %23 = vector.broadcast %22 : vector<32x1xf32> to vector<32x128xf32>
    %24 = arith.addf %21, %23 : vector<32x128xf32>
    %cst_14 = arith.constant 0.000000e+00 : f32
    %25 = vector.broadcast %cst_14 : f32 to vector<32x128xf32>
    %26 = arith.maximumf %24, %25 : vector<32x128xf32>
    %27 = arith.truncf %26 : vector<32x128xf32> to vector<32x128xbf16>
    %c128 = arith.constant 128 : index
    %c0_15 = arith.constant 0 : index
    %28 = vector.load %arg2[%c128, %c0_15] : memref<336x128xbf16, #tpu.memory_space<vmem>>, vector<32x32xbf16>
    %c128_16 = arith.constant 128 : index
    %c64_17 = arith.constant 64 : index
    %29 = vector.load %arg2[%c128_16, %c64_17] : memref<336x128xbf16, #tpu.memory_space<vmem>>, vector<32x1xbf16>
    %cst_18 = arith.constant dense<0.000000e+00> : vector<32x128xf32>
    %30 = tpu.matmul %28, %27, %cst_18 {dimension_numbers = #tpu.dot_dimension_numbers<[1], [0], [0], [1], [0, 0, 1, 1], [], []>} : vector<32x32xbf16>, vector<32x128xbf16>, vector<32x128xf32> -> vector<32x128xf32>
    %31 = arith.extf %29 : vector<32x1xbf16> to vector<32x1xf32>
    %32 = vector.broadcast %31 : vector<32x1xf32> to vector<32x128xf32>
    %33 = arith.addf %30, %32 : vector<32x128xf32>
    %cst_19 = arith.constant 0.000000e+00 : f32
    %34 = vector.broadcast %cst_19 : f32 to vector<32x128xf32>
    %35 = arith.maximumf %33, %34 : vector<32x128xf32>
    %36 = arith.truncf %35 : vector<32x128xf32> to vector<32x128xbf16>
    %c160 = arith.constant 160 : index
    %c0_20 = arith.constant 0 : index
    %37 = vector.load %arg2[%c160, %c0_20] : memref<336x128xbf16, #tpu.memory_space<vmem>>, vector<32x32xbf16>
    %c160_21 = arith.constant 160 : index
    %c64_22 = arith.constant 64 : index
    %38 = vector.load %arg2[%c160_21, %c64_22] : memref<336x128xbf16, #tpu.memory_space<vmem>>, vector<32x1xbf16>
    %cst_23 = arith.constant dense<0.000000e+00> : vector<32x128xf32>
    %39 = tpu.matmul %37, %36, %cst_23 {dimension_numbers = #tpu.dot_dimension_numbers<[1], [0], [0], [1], [0, 0, 1, 1], [], []>} : vector<32x32xbf16>, vector<32x128xbf16>, vector<32x128xf32> -> vector<32x128xf32>
    %40 = arith.extf %38 : vector<32x1xbf16> to vector<32x1xf32>
    %41 = vector.broadcast %40 : vector<32x1xf32> to vector<32x128xf32>
    %42 = arith.addf %39, %41 : vector<32x128xf32>
    %43 = arith.extf %27 : vector<32x128xbf16> to vector<32x128xf32>
    %44 = arith.addf %42, %43 : vector<32x128xf32>
    %45 = arith.truncf %44 : vector<32x128xf32> to vector<32x128xbf16>
    %c192 = arith.constant 192 : index
    %c0_24 = arith.constant 0 : index
    %46 = vector.load %arg2[%c192, %c0_24] : memref<336x128xbf16, #tpu.memory_space<vmem>>, vector<32x32xbf16>
    %c192_25 = arith.constant 192 : index
    %c64_26 = arith.constant 64 : index
    %47 = vector.load %arg2[%c192_25, %c64_26] : memref<336x128xbf16, #tpu.memory_space<vmem>>, vector<32x1xbf16>
    %cst_27 = arith.constant dense<0.000000e+00> : vector<32x128xf32>
    %48 = tpu.matmul %46, %45, %cst_27 {dimension_numbers = #tpu.dot_dimension_numbers<[1], [0], [0], [1], [0, 0, 1, 1], [], []>} : vector<32x32xbf16>, vector<32x128xbf16>, vector<32x128xf32> -> vector<32x128xf32>
    %49 = arith.extf %47 : vector<32x1xbf16> to vector<32x1xf32>
    %50 = vector.broadcast %49 : vector<32x1xf32> to vector<32x128xf32>
    %51 = arith.addf %48, %50 : vector<32x128xf32>
    %cst_28 = arith.constant 0.000000e+00 : f32
    %52 = vector.broadcast %cst_28 : f32 to vector<32x128xf32>
    %53 = arith.maximumf %51, %52 : vector<32x128xf32>
    %54 = arith.truncf %53 : vector<32x128xf32> to vector<32x128xbf16>
    %c224 = arith.constant 224 : index
    %c0_29 = arith.constant 0 : index
    %55 = vector.load %arg2[%c224, %c0_29] : memref<336x128xbf16, #tpu.memory_space<vmem>>, vector<32x32xbf16>
    %c224_30 = arith.constant 224 : index
    %c64_31 = arith.constant 64 : index
    %56 = vector.load %arg2[%c224_30, %c64_31] : memref<336x128xbf16, #tpu.memory_space<vmem>>, vector<32x1xbf16>
    %cst_32 = arith.constant dense<0.000000e+00> : vector<32x128xf32>
    %57 = tpu.matmul %55, %54, %cst_32 {dimension_numbers = #tpu.dot_dimension_numbers<[1], [0], [0], [1], [0, 0, 1, 1], [], []>} : vector<32x32xbf16>, vector<32x128xbf16>, vector<32x128xf32> -> vector<32x128xf32>
    %58 = arith.extf %56 : vector<32x1xbf16> to vector<32x1xf32>
    %59 = vector.broadcast %58 : vector<32x1xf32> to vector<32x128xf32>
    %60 = arith.addf %57, %59 : vector<32x128xf32>
    %61 = arith.extf %45 : vector<32x128xbf16> to vector<32x128xf32>
    %62 = arith.addf %60, %61 : vector<32x128xf32>
    %63 = arith.truncf %62 : vector<32x128xf32> to vector<32x128xbf16>
    %c256 = arith.constant 256 : index
    %c0_33 = arith.constant 0 : index
    %64 = vector.load %arg2[%c256, %c0_33] : memref<336x128xbf16, #tpu.memory_space<vmem>>, vector<32x32xbf16>
    %c256_34 = arith.constant 256 : index
    %c64_35 = arith.constant 64 : index
    %65 = vector.load %arg2[%c256_34, %c64_35] : memref<336x128xbf16, #tpu.memory_space<vmem>>, vector<32x1xbf16>
    %cst_36 = arith.constant dense<0.000000e+00> : vector<32x128xf32>
    %66 = tpu.matmul %64, %63, %cst_36 {dimension_numbers = #tpu.dot_dimension_numbers<[1], [0], [0], [1], [0, 0, 1, 1], [], []>} : vector<32x32xbf16>, vector<32x128xbf16>, vector<32x128xf32> -> vector<32x128xf32>
    %67 = arith.extf %65 : vector<32x1xbf16> to vector<32x1xf32>
    %68 = vector.broadcast %67 : vector<32x1xf32> to vector<32x128xf32>
    %69 = arith.addf %66, %68 : vector<32x128xf32>
    %cst_37 = arith.constant 0.000000e+00 : f32
    %70 = vector.broadcast %cst_37 : f32 to vector<32x128xf32>
    %71 = arith.maximumf %69, %70 : vector<32x128xf32>
    %72 = arith.truncf %71 : vector<32x128xf32> to vector<32x128xbf16>
    %c288 = arith.constant 288 : index
    %c0_38 = arith.constant 0 : index
    %73 = vector.load %arg2[%c288, %c0_38] : memref<336x128xbf16, #tpu.memory_space<vmem>>, vector<32x32xbf16>
    %c288_39 = arith.constant 288 : index
    %c64_40 = arith.constant 64 : index
    %74 = vector.load %arg2[%c288_39, %c64_40] : memref<336x128xbf16, #tpu.memory_space<vmem>>, vector<32x1xbf16>
    %cst_41 = arith.constant dense<0.000000e+00> : vector<32x128xf32>
    %75 = tpu.matmul %73, %72, %cst_41 {dimension_numbers = #tpu.dot_dimension_numbers<[1], [0], [0], [1], [0, 0, 1, 1], [], []>} : vector<32x32xbf16>, vector<32x128xbf16>, vector<32x128xf32> -> vector<32x128xf32>
    %76 = arith.extf %74 : vector<32x1xbf16> to vector<32x1xf32>
    %77 = vector.broadcast %76 : vector<32x1xf32> to vector<32x128xf32>
    %78 = arith.addf %75, %77 : vector<32x128xf32>
    %79 = arith.extf %63 : vector<32x128xbf16> to vector<32x128xf32>
    %80 = arith.addf %78, %79 : vector<32x128xf32>
    %81 = arith.truncf %80 : vector<32x128xf32> to vector<32x128xbf16>
    %c320 = arith.constant 320 : index
    %c0_42 = arith.constant 0 : index
    %82 = vector.load %arg2[%c320, %c0_42] : memref<336x128xbf16, #tpu.memory_space<vmem>>, vector<12x32xbf16>
    %c320_43 = arith.constant 320 : index
    %c64_44 = arith.constant 64 : index
    %83 = vector.load %arg2[%c320_43, %c64_44] : memref<336x128xbf16, #tpu.memory_space<vmem>>, vector<12x1xbf16>
    %cst_45 = arith.constant dense<0.000000e+00> : vector<12x128xf32>
    %84 = tpu.matmul %82, %81, %cst_45 {dimension_numbers = #tpu.dot_dimension_numbers<[1], [0], [0], [1], [0, 0, 1, 1], [], []>} : vector<12x32xbf16>, vector<32x128xbf16>, vector<12x128xf32> -> vector<12x128xf32>
    %85 = arith.extf %83 : vector<12x1xbf16> to vector<12x1xf32>
    %86 = vector.broadcast %85 : vector<12x1xf32> to vector<12x128xf32>
    %87 = arith.addf %84, %86 : vector<12x128xf32>
    %c0_46 = arith.constant 0 : index
    %c0_47 = arith.constant 0 : index
    %88 = vector.load %arg3[%c0_46, %c0_47] : memref<12x128xf32, #tpu.memory_space<vmem>>, vector<12x128xf32>
    tpu.vector_store %arg3[%c0_46, %c0_47], %87 {strides = array<i32>} : memref<12x128xf32, #tpu.memory_space<vmem>>, vector<12x128xf32>,
    return
  }
  func.func @transform_0(%arg0: i32) -> (i32, i32) {
    %c0_i32 = arith.constant 0 : i32
    %c0_i32_0 = arith.constant 0 : i32
    return %c0_i32, %arg0 : i32, i32
  }
  func.func @transform_1(%arg0: i32) -> (i32, i32) {
    %c0_i32 = arith.constant 0 : i32
    %c0_i32_0 = arith.constant 0 : i32
    %c0_i32_1 = arith.constant 0 : i32
    return %c0_i32, %c0_i32_0 : i32, i32
  }
  func.func @transform_2(%arg0: i32) -> (i32, i32) {
    %c0_i32 = arith.constant 0 : i32
    %c0_i32_0 = arith.constant 0 : i32
    return %c0_i32, %arg0 : i32, i32
  }
}

</mosaic_0001>

<llo_original>
// kernel: ts3d_forward.1
$region0: #{ts3d_forward.1}
  #allocation0 [shape = 'u32[]', space=smem, size = 0x4, offset = 0x4, fixed_abs, tag = 'smem constant byte address 0x4 - core index']
  #allocation1 [shape = 'u32[72,128]{1,0:T(1,128)}', space=vmem, size = 0x9000, scoped, tag = 'internal scratch']
  %s0 = inlined_call_operand.vmem [shape: bf16[12,128], index: 0, kind: input, shape index: {}]
  %s1 = inlined_call_operand.hbm [shape: bf16[336,128], index: 1, kind: input, shape index: {}]
  %s2 = inlined_call_operand.vmem [shape: f32[12,128], index: 2, kind: output, shape index: {}]
  %s3 = sld [smem:[#allocation0]]
  $region22: #{ts3d_forward.1} parent=0
    _
  %s5 = ssub.s32 1, %s3
  %s6 = scalar_select 0, %s5, %s3
  $region1: #{ts3d_forward.1} parent=0
    #allocation2 [shape = 'u8[86016]{0}', space=vmem, size = 0x15000, scoped, tag = 'input window, operand 1, single buffered']
    #allocation3 [shape = 's32[1]{0}', space=sflag, size = 0x4, scoped, tag = 'scoped memory for ts3d_forward.1']
    %7 = vsyncpa [#allocation3], 0
    // Predicated region
    $region2: #{ts3d_forward.1} parent=1 // pred_check
      _
    $region3: #{ts3d_forward.1} parent=1 // pred_check_branch
      %9 = sbr.rel (0) target = $region5
    $region4: #{ts3d_forward.1} parent=1 // pred_region
      _
    $region5: #{ts3d_forward.1} parent=1 // pred_fallthru
      _
    // Predicated region
    $region6: #{ts3d_forward.1} parent=1 // pred_check
      _
    $region7: #{ts3d_forward.1} parent=1 // pred_check_branch
      %11 = sbr.rel (0) target = $region9
    $region8: #{ts3d_forward.1} parent=1 // pred_region
      %13 = vsyncadd [#allocation3], 0
      %s14 = sshll.u32 %s1, 4
      %s15 = int_to_ptr.hbm [resolvable:$true] %s14
      %s16 = sshll.u32 [#allocation2], 4
      %s17 = int_to_ptr.vmem [resolvable:$true] %s16
      %22 = dma.hbm_to_vmem [thread:$0]  %s15, 2688, %s17, [#allocation3], 64, 64, 4
    $region9: #{ts3d_forward.1} parent=1 // pred_fallthru
      _
    // Predicated region
    $region10: #{ts3d_forward.1} parent=1 // pred_check
      _
    $region11: #{ts3d_forward.1} parent=1 // pred_check_branch
      %24 = sbr.rel (0) target = $region13
    $region12: #{ts3d_forward.1} parent=1 // pred_region
      %26 = dma.done [#allocation3], 2688
    $region13: #{ts3d_forward.1} parent=1 // pred_fallthru
      _
    %v28 = vld [vmem:[%s0] sm:$0xf]
    %v29 = vld [vmem:[%s0 + $0x4] sm:$0x3]
    %v30 = vld [vmem:[#allocation2] sm:$0xf]
    %v31 = vld [vmem:[#allocation2 + $0x4] sm:$0xf]
    %v32 = vld [vmem:[#allocation2 + $0x8] sm:$0xf]
    %v33 = vld [vmem:[#allocation2 + $0xc] sm:$0xf]
    %v34 = vunpack.c.l.bf16 %v30
    %v35 = vunpack.c.l.bf16 %v31
    %v36 = vunpack.c.l.bf16 %v32
    %v37 = vunpack.c.l.bf16 %v33
    %39 = vset.pattern.permute.xlu0 64
    %40 = vperm.xlu0 %39, %v34
    %v41 = vpop.permute.xlu0 %40
    %44 = vset.pattern.permute.xlu0 64
    %45 = vperm.xlu0 %44, %v35
    %v46 = vpop.permute.xlu0 %45
    %49 = vset.pattern.permute.xlu0 64
    %50 = vperm.xlu0 %49, %v36
    %v51 = vpop.permute.xlu0 %50
    %54 = vset.pattern.permute.xlu0 64
    %55 = vperm.xlu0 %54, %v37
    %v56 = vpop.permute.xlu0 %55
    %v62 = vunpack.c.l.b16 %v30
    %v63 = vunpack.c.l.b16 %v31
    %v64 = vunpack.c.l.b16 %v32
    %v65 = vunpack.c.l.b16 %v33
    %v66 = vpack.c.b16 %v63, %v62
    %v67 = vpack.c.b16 %v65, %v64
    %v70 = vunpack.c.l.b16 %v28
    %v71 = vunpack.c.l.b16 %v29
    %v72 = vpack.c.b16 %v71, %v70
    %vm73 = vcmask 97280
    %v75 = vsel %vm73, %v66, 0
    %v78 = vsel %vm73, %v67, 0
    %vm80 = vcmask 1045504
    %v82 = vsel %vm80, %v72, 0
    %84 = vmatpush.bf16.msra.mxu0 0
    %85 = vmatpush.bf16.msra.mxu0 0
    %86 = vmatpush.bf16.msra.mxu0 0
    %87 = vmatpush.bf16.msra.mxu0 0
    %88 = vmatpush.bf16.msra.mxu0 0
    %89 = vmatpush.bf16.msra.mxu0 0
    %90 = vmatpush.bf16.msra.mxu0 0
    %91 = vmatpush.bf16.msra.mxu0 %v82
    %92 = vmatmul.bf16.gmra.mxu0 %v75
    %v93 = vpop.f32.mrf.mxu0
    %v94 = vadd.f32 %v41, %v93
    %v95 = vpop.f32.mrf.mxu0
    %v96 = vadd.f32 %v46, %v95
    %97 = vmatmul.bf16.gmra.mxu0 %v78
    %v98 = vpop.f32.mrf.mxu0
    %v99 = vadd.f32 %v51, %v98
    %v100 = vpop.f32.mrf.mxu0
    %v101 = vadd.f32 %v56, %v100
    %102 = vdwg.mxu0
    %v103 = vmax.f32 %v94, 0.0
    %v104 = vmax.f32 %v96, 0.0
    %v105 = vmax.f32 %v99, 0.0
    %v106 = vmax.f32 %v101, 0.0
    %v107 = vpack.c.bf16 %v104, %v103
    %v108 = vpack.c.bf16 %v106, %v105
    %v109 = vld [vmem:[#allocation2 + $0x10] sm:$0xf]
    %v110 = vld [vmem:[#allocation2 + $0x14] sm:$0xf]
    %v111 = vld [vmem:[#allocation2 + $0x18] sm:$0xf]
    %v112 = vld [vmem:[#allocation2 + $0x1c] sm:$0xf]
    %v113 = vld [vmem:[#allocation2 + $0x20] sm:$0xf]
    %v114 = vld [vmem:[#allocation2 + $0x24] sm:$0xf]
    %v115 = vld [vmem:[#allocation2 + $0x28] sm:$0xf]
    %v116 = vld [vmem:[#allocation2 + $0x2c] sm:$0xf]
    %v117 = vunpack.c.l.bf16 %v109
    %v118 = vunpack.c.l.bf16 %v110
    %v119 = vunpack.c.l.bf16 %v111
    %v120 = vunpack.c.l.bf16 %v112
    %v121 = vunpack.c.l.bf16 %v113
    %v122 = vunpack.c.l.bf16 %v114
    %v123 = vunpack.c.l.bf16 %v115
    %v124 = vunpack.c.l.bf16 %v116
    %126 = vset.pattern.permute.xlu0 64
    %127 = vperm.xlu0 %126, %v117
    %v128 = vpop.permute.xlu0 %127
    %131 = vset.pattern.permute.xlu0 64
    %132 = vperm.xlu0 %131, %v118
    %v133 = vpop.permute.xlu0 %132
    %136 = vset.pattern.permute.xlu0 64
    %137 = vperm.xlu0 %136, %v119
    %v138 = vpop.permute.xlu0 %137
    %141 = vset.pattern.permute.xlu0 64
    %142 = vperm.xlu0 %141, %v120
    %v143 = vpop.permute.xlu0 %142
    %146 = vset.pattern.permute.xlu0 64
    %147 = vperm.xlu0 %146, %v121
    %v148 = vpop.permute.xlu0 %147
    %151 = vset.pattern.permute.xlu0 64
    %152 = vperm.xlu0 %151, %v122
    %v153 = vpop.permute.xlu0 %152
    %156 = vset.pattern.permute.xlu0 64
    %157 = vperm.xlu0 %156, %v123
    %v158 = vpop.permute.xlu0 %157
    %161 = vset.pattern.permute.xlu0 64
    %162 = vperm.xlu0 %161, %v124
    %v163 = vpop.permute.xlu0 %162
    %v173 = vunpack.c.l.b16 %v109
    %v174 = vunpack.c.l.b16 %v110
    %v175 = vunpack.c.l.b16 %v111
    %v176 = vunpack.c.l.b16 %v112
    %v177 = vunpack.c.l.b16 %v113
    %v178 = vunpack.c.l.b16 %v114
    %v179 = vunpack.c.l.b16 %v115
    %v180 = vunpack.c.l.b16 %v116
    %v181 = vpack.c.b16 %v174, %v173
    %v182 = vpack.c.b16 %v176, %v175
    %v183 = vpack.c.b16 %v178, %v177
    %v184 = vpack.c.b16 %v180, %v179
    %vm185 = vcmask 261120
    %v187 = vsel %vm185, %v181, 0
    %v190 = vsel %vm185, %v182, 0
    %v193 = vsel %vm185, %v183, 0
    %v196 = vsel %vm185, %v184, 0
    %198 = vmatpush.bf16.msra.mxu0 0
    %199 = vmatpush.bf16.msra.mxu0 0
    %200 = vmatpush.bf16.msra.mxu0 0
    %201 = vmatpush.bf16.msra.mxu0 0
    %202 = vmatpush.bf16.msra.mxu0 0
    %203 = vmatpush.bf16.msra.mxu0 0
    %204 = vmatpush.bf16.msra.mxu0 %v108
    %205 = vmatpush.bf16.msra.mxu0 %v107
    %206 = vmatmul.bf16.gmra.mxu0 %v187
    %v207 = vpop.f32.mrf.mxu0
    %v208 = vadd.f32 %v128, %v207
    %v209 = vpop.f32.mrf.mxu0
    %v210 = vadd.f32 %v133, %v209
    %211 = vmatmul.bf16.gmra.mxu0 %v190
    %v212 = vpop.f32.mrf.mxu0
    %v213 = vadd.f32 %v138, %v212
    %v214 = vpop.f32.mrf.mxu0
    %v215 = vadd.f32 %v143, %v214
    %216 = vmatmul.bf16.gmra.mxu0 %v193
    %v217 = vpop.f32.mrf.mxu0
    %v218 = vadd.f32 %v148, %v217
    %v219 = vpop.f32.mrf.mxu0
    %v220 = vadd.f32 %v153, %v219
    %221 = vmatmul.bf16.gmra.mxu0 %v196
    %v222 = vpop.f32.mrf.mxu0
    %v223 = vadd.f32 %v158, %v222
    %v224 = vpop.f32.mrf.mxu0
    %v225 = vadd.f32 %v163, %v224
    %226 = vdwg.mxu0
    %v227 = vmax.f32 %v208, 0.0
    %v228 = vmax.f32 %v210, 0.0
    %v229 = vmax.f32 %v213, 0.0
    %v230 = vmax.f32 %v215, 0.0
    %v231 = vmax.f32 %v218, 0.0
    %v232 = vmax.f32 %v220, 0.0
    %v233 = vmax.f32 %v223, 0.0
    %v234 = vmax.f32 %v225, 0.0
    %v235 = vpack.c.bf16 %v228, %v227
    %v236 = vpack.c.bf16 %v230, %v229
    %v237 = vpack.c.bf16 %v232, %v231
    %v238 = vpack.c.bf16 %v234, %v233
    %v239 = vld [vmem:[#allocation2 + $0x30] sm:$0xf]
    %v240 = vld [vmem:[#allocation2 + $0x34] sm:$0xf]
    %v241 = vld [vmem:[#allocation2 + $0x38] sm:$0xf]
    %v242 = vld [vmem:[#allocation2 + $0x3c] sm:$0xf]
    %v243 = vunpack.c.l.bf16 %v239
    %v244 = vunpack.c.l.bf16 %v240
    %v245 = vunpack.c.l.bf16 %v241
    %v246 = vunpack.c.l.bf16 %v242
    %248 = vset.pattern.permute.xlu0 64
    %249 = vperm.xlu0 %248, %v243
    %v250 = vpop.permute.xlu0 %249
    %253 = vset.pattern.permute.xlu0 64
    %254 = vperm.xlu0 %253, %v244
    %v255 = vpop.permute.xlu0 %254
    %258 = vset.pattern.permute.xlu0 64
    %259 = vperm.xlu0 %258, %v245
    %v260 = vpop.permute.xlu0 %259
    %263 = vset.pattern.permute.xlu0 64
    %264 = vperm.xlu0 %263, %v246
    %v265 = vpop.permute.xlu0 %264
    %v271 = vunpack.c.l.b16 %v239
    %v272 = vunpack.c.l.b16 %v240
    %v273 = vunpack.c.l.b16 %v241
    %v274 = vunpack.c.l.b16 %v242
    %v275 = vpack.c.b16 %v272, %v271
    %v276 = vpack.c.b16 %v274, %v273
    %vm277 = vcmask 523264
    %v279 = vsel %vm277, %v275, 0
    %v282 = vsel %vm277, %v276, 0
    %284 = vmatpush.bf16.msra.mxu0 0
    %285 = vmatpush.bf16.msra.mxu0 0
    %286 = vmatpush.bf16.msra.mxu0 0
    %287 = vmatpush.bf16.msra.mxu0 0
    %288 = vmatpush.bf16.msra.mxu0 %v238
    %289 = vmatpush.bf16.msra.mxu0 %v237
    %290 = vmatpush.bf16.msra.mxu0 %v236
    %291 = vmatpush.bf16.msra.mxu0 %v235
    %292 = vmatmul.bf16.gmra.mxu0 %v279
    %v293 = vpop.f32.mrf.mxu0
    %v294 = vadd.f32 %v250, %v293
    %v295 = vpop.f32.mrf.mxu0
    %v296 = vadd.f32 %v255, %v295
    %297 = vmatmul.bf16.gmra.mxu0 %v282
    %v298 = vpop.f32.mrf.mxu0
    %v299 = vadd.f32 %v260, %v298
    %v300 = vpop.f32.mrf.mxu0
    %v301 = vadd.f32 %v265, %v300
    %302 = vdwg.mxu0
    %v303 = vmax.f32 %v294, 0.0
    %v304 = vmax.f32 %v296, 0.0
    %v305 = vmax.f32 %v299, 0.0
    %v306 = vmax.f32 %v301, 0.0
    %v307 = vpack.c.bf16 %v303, %v303
    %v308 = vpack.c.bf16 %v304, %v304
    %v309 = vpack.c.bf16 %v305, %v305
    %v310 = vpack.c.bf16 %v306, %v306
    %v311 = vld [vmem:[#allocation2 + $0x40] sm:$0xf]
    %v312 = vld [vmem:[#allocation2 + $0x44] sm:$0xf]
    %v313 = vld [vmem:[#allocation2 + $0x48] sm:$0xf]
    %v314 = vld [vmem:[#allocation2 + $0x4c] sm:$0xf]
    %v315 = vunpack.c.l.bf16 %v311
    %v316 = vunpack.c.l.bf16 %v312
    %v317 = vunpack.c.l.bf16 %v313
    %v318 = vunpack.c.l.bf16 %v314
    %320 = vset.pattern.permute.xlu0 64
    %321 = vperm.xlu0 %320, %v315
    %v322 = vpop.permute.xlu0 %321
    %325 = vset.pattern.permute.xlu0 64
    %326 = vperm.xlu0 %325, %v316
    %v327 = vpop.permute.xlu0 %326
    %330 = vset.pattern.permute.xlu0 64
    %331 = vperm.xlu0 %330, %v317
    %v332 = vpop.permute.xlu0 %331
    %335 = vset.pattern.permute.xlu0 64
    %336 = vperm.xlu0 %335, %v318
    %v337 = vpop.permute.xlu0 %336
    %v343 = vunpack.c.l.b16 %v311
    %v344 = vunpack.c.l.b16 %v312
    %v345 = vunpack.c.l.b16 %v313
    %v346 = vunpack.c.l.b16 %v314
    %v347 = vpack.c.b16 %v344, %v343
    %v348 = vpack.c.b16 %v346, %v345
    %v353 = vunpack.c.l.b16 %v307
    %v354 = vunpack.c.l.b16 %v308
    %v355 = vunpack.c.l.b16 %v309
    %v356 = vunpack.c.l.b16 %v310
    %v357 = vpack.c.b16 %v354, %v353
    %v358 = vpack.c.b16 %v356, %v355
    %v362 = vsel %vm185, %v347, 0
    %v365 = vsel %vm185, %v348, 0
    %367 = vmatpush.bf16.msra.mxu0 0
    %368 = vmatpush.bf16.msra.mxu0 0
    %369 = vmatpush.bf16.msra.mxu0 0
    %370 = vmatpush.bf16.msra.mxu0 0
    %371 = vmatpush.bf16.msra.mxu0 0
    %372 = vmatpush.bf16.msra.mxu0 0
    %373 = vmatpush.bf16.msra.mxu0 %v358
    %374 = vmatpush.bf16.msra.mxu0 %v357
    %375 = vmatmul.bf16.gmra.mxu0 %v362
    %v376 = vpop.f32.mrf.mxu0
    %v377 = vadd.f32 %v322, %v376
    %v378 = vpop.f32.mrf.mxu0
    %v379 = vadd.f32 %v327, %v378
    %380 = vmatmul.bf16.gmra.mxu0 %v365
    %v381 = vpop.f32.mrf.mxu0
    %v382 = vadd.f32 %v332, %v381
    %v383 = vpop.f32.mrf.mxu0
    %v384 = vadd.f32 %v337, %v383
    %385 = vdwg.mxu0
    %v386 = vmax.f32 %v377, 0.0
    %v387 = vmax.f32 %v379, 0.0
    %v388 = vmax.f32 %v382, 0.0
    %v389 = vmax.f32 %v384, 0.0
    %v390 = vpack.c.bf16 %v387, %v386
    %v391 = vpack.c.bf16 %v389, %v388
    %v392 = vld [vmem:[#allocation2 + $0x50] sm:$0xf]
    %v393 = vld [vmem:[#allocation2 + $0x54] sm:$0xf]
    %v394 = vld [vmem:[#allocation2 + $0x58] sm:$0xf]
    %v395 = vld [vmem:[#allocation2 + $0x5c] sm:$0xf]
    %v396 = vunpack.c.l.bf16 %v392
    %v397 = vunpack.c.l.bf16 %v393
    %v398 = vunpack.c.l.bf16 %v394
    %v399 = vunpack.c.l.bf16 %v395
    %401 = vset.pattern.permute.xlu0 64
    %402 = vperm.xlu0 %401, %v396
    %v403 = vpop.permute.xlu0 %402
    %406 = vset.pattern.permute.xlu0 64
    %407 = vperm.xlu0 %406, %v397
    %v408 = vpop.permute.xlu0 %407
    %411 = vset.pattern.permute.xlu0 64
    %412 = vperm.xlu0 %411, %v398
    %v413 = vpop.permute.xlu0 %412
    %416 = vset.pattern.permute.xlu0 64
    %417 = vperm.xlu0 %416, %v399
    %v418 = vpop.permute.xlu0 %417
    %v424 = vunpack.c.l.b16 %v392
    %v425 = vunpack.c.l.b16 %v393
    %v426 = vunpack.c.l.b16 %v394
    %v427 = vunpack.c.l.b16 %v395
    %v428 = vpack.c.b16 %v425, %v424
    %v429 = vpack.c.b16 %v427, %v426
    %v431 = vsel %vm185, %v428, 0
    %v434 = vsel %vm185, %v429, 0
    %436 = vmatpush.bf16.msra.mxu0 0
    %437 = vmatpush.bf16.msra.mxu0 0
    %438 = vmatpush.bf16.msra.mxu0 0
    %439 = vmatpush.bf16.msra.mxu0 0
    %440 = vmatpush.bf16.msra.mxu0 0
    %441 = vmatpush.bf16.msra.mxu0 0
    %442 = vmatpush.bf16.msra.mxu0 %v391
    %443 = vmatpush.bf16.msra.mxu0 %v390
    %444 = vmatmul.bf16.gmra.mxu0 %v431
    %v445 = vpop.f32.mrf.mxu0
    %v446 = vadd.f32 %v403, %v445
    %v447 = vpop.f32.mrf.mxu0
    %v448 = vadd.f32 %v408, %v447
    %449 = vmatmul.bf16.gmra.mxu0 %v434
    %v450 = vpop.f32.mrf.mxu0
    %v451 = vadd.f32 %v413, %v450
    %v452 = vpop.f32.mrf.mxu0
    %v453 = vadd.f32 %v418, %v452
    %454 = vdwg.mxu0
    %v455 = vunpack.c.l.bf16 %v307
    %v456 = vunpack.c.l.bf16 %v308
    %v457 = vunpack.c.l.bf16 %v309
    %v458 = vunpack.c.l.bf16 %v310
    %v459 = vadd.f32 %v446, %v455
    %v460 = vadd.f32 %v448, %v456
    %v461 = vadd.f32 %v451, %v457
    %v462 = vadd.f32 %v453, %v458
    %v463 = vpack.c.bf16 %v459, %v459
    %v464 = vpack.c.bf16 %v460, %v460
    %v465 = vpack.c.bf16 %v461, %v461
    %v466 = vpack.c.bf16 %v462, %v462
    %v467 = vld [vmem:[#allocation2 + $0x60] sm:$0xf]
    %v468 = vld [vmem:[#allocation2 + $0x64] sm:$0xf]
    %v469 = vld [vmem:[#allocation2 + $0x68] sm:$0xf]
    %v470 = vld [vmem:[#allocation2 + $0x6c] sm:$0xf]
    %v471 = vunpack.c.l.bf16 %v467
    %v472 = vunpack.c.l.bf16 %v468
    %v473 = vunpack.c.l.bf16 %v469
    %v474 = vunpack.c.l.bf16 %v470
    %476 = vset.pattern.permute.xlu0 64
    %477 = vperm.xlu0 %476, %v471
    %v478 = vpop.permute.xlu0 %477
    %481 = vset.pattern.permute.xlu0 64
    %482 = vperm.xlu0 %481, %v472
    %v483 = vpop.permute.xlu0 %482
    %486 = vset.pattern.permute.xlu0 64
    %487 = vperm.xlu0 %486, %v473
    %v488 = vpop.permute.xlu0 %487
    %491 = vset.pattern.permute.xlu0 64
    %492 = vperm.xlu0 %491, %v474
    %v493 = vpop.permute.xlu0 %492
    %v499 = vunpack.c.l.b16 %v467
    %v500 = vunpack.c.l.b16 %v468
    %v501 = vunpack.c.l.b16 %v469
    %v502 = vunpack.c.l.b16 %v470
    %v503 = vpack.c.b16 %v500, %v499
    %v504 = vpack.c.b16 %v502, %v501
    %v509 = vunpack.c.l.b16 %v463
    %v510 = vunpack.c.l.b16 %v464
    %v511 = vunpack.c.l.b16 %v465
    %v512 = vunpack.c.l.b16 %v466
    %v513 = vpack.c.b16 %v510, %v509
    %v514 = vpack.c.b16 %v512, %v511
    %v518 = vsel %vm185, %v503, 0
    %v521 = vsel %vm185, %v504, 0
    %523 = vmatpush.bf16.msra.mxu0 0
    %524 = vmatpush.bf16.msra.mxu0 0
    %525 = vmatpush.bf16.msra.mxu0 0
    %526 = vmatpush.bf16.msra.mxu0 0
    %527 = vmatpush.bf16.msra.mxu0 0
    %528 = vmatpush.bf16.msra.mxu0 0
    %529 = vmatpush.bf16.msra.mxu0 %v514
    %530 = vmatpush.bf16.msra.mxu0 %v513
    %531 = vmatmul.bf16.gmra.mxu0 %v518
    %v532 = vpop.f32.mrf.mxu0
    %v533 = vadd.f32 %v478, %v532
    %v534 = vpop.f32.mrf.mxu0
    %v535 = vadd.f32 %v483, %v534
    %536 = vmatmul.bf16.gmra.mxu0 %v521
    %v537 = vpop.f32.mrf.mxu0
    %v538 = vadd.f32 %v488, %v537
    %v539 = vpop.f32.mrf.mxu0
    %v540 = vadd.f32 %v493, %v539
    %541 = vdwg.mxu0
    %v542 = vmax.f32 %v533, 0.0
    %v543 = vmax.f32 %v535, 0.0
    %v544 = vmax.f32 %v538, 0.0
    %v545 = vmax.f32 %v540, 0.0
    %v546 = vpack.c.bf16 %v543, %v542
    %v547 = vpack.c.bf16 %v545, %v544
    %v548 = vld [vmem:[#allocation2 + $0x70] sm:$0xf]
    %v549 = vld [vmem:[#allocation2 + $0x74] sm:$0xf]
    %v550 = vld [vmem:[#allocation2 + $0x78] sm:$0xf]
    %v551 = vld [vmem:[#allocation2 + $0x7c] sm:$0xf]
    %v552 = vunpack.c.l.bf16 %v548
    %v553 = vunpack.c.l.bf16 %v549
    %v554 = vunpack.c.l.bf16 %v550
    %v555 = vunpack.c.l.bf16 %v551
    %557 = vset.pattern.permute.xlu0 64
    %558 = vperm.xlu0 %557, %v552
    %v559 = vpop.permute.xlu0 %558
    %562 = vset.pattern.permute.xlu0 64
    %563 = vperm.xlu0 %562, %v553
    %v564 = vpop.permute.xlu0 %563
    %567 = vset.pattern.permute.xlu0 64
    %568 = vperm.xlu0 %567, %v554
    %v569 = vpop.permute.xlu0 %568
    %572 = vset.pattern.permute.xlu0 64
    %573 = vperm.xlu0 %572, %v555
    %v574 = vpop.permute.xlu0 %573
    %v580 = vunpack.c.l.b16 %v548
    %v581 = vunpack.c.l.b16 %v549
    %v582 = vunpack.c.l.b16 %v550
    %v583 = vunpack.c.l.b16 %v551
    %v584 = vpack.c.b16 %v581, %v580
    %v585 = vpack.c.b16 %v583, %v582
    %v587 = vsel %vm185, %v584, 0
    %v590 = vsel %vm185, %v585, 0
    %592 = vmatpush.bf16.msra.mxu0 0
    %593 = vmatpush.bf16.msra.mxu0 0
    %594 = vmatpush.bf16.msra.mxu0 0
    %595 = vmatpush.bf16.msra.mxu0 0
    %596 = vmatpush.bf16.msra.mxu0 0
    %597 = vmatpush.bf16.msra.mxu0 0
    %598 = vmatpush.bf16.msra.mxu0 %v547
    %599 = vmatpush.bf16.msra.mxu0 %v546
    %600 = vmatmul.bf16.gmra.mxu0 %v587
    %v601 = vpop.f32.mrf.mxu0
    %v602 = vadd.f32 %v559, %v601
    %v603 = vpop.f32.mrf.mxu0
    %v604 = vadd.f32 %v564, %v603
    %605 = vmatmul.bf16.gmra.mxu0 %v590
    %v606 = vpop.f32.mrf.mxu0
    %v607 = vadd.f32 %v569, %v606
    %v608 = vpop.f32.mrf.mxu0
    %v609 = vadd.f32 %v574, %v608
    %610 = vdwg.mxu0
    %v611 = vunpack.c.l.bf16 %v463
    %v612 = vunpack.c.l.bf16 %v464
    %v613 = vunpack.c.l.bf16 %v465
    %v614 = vunpack.c.l.bf16 %v466
    %v615 = vadd.f32 %v602, %v611
    %v616 = vadd.f32 %v604, %v612
    %v617 = vadd.f32 %v607, %v613
    %v618 = vadd.f32 %v609, %v614
    %v619 = vpack.c.bf16 %v615, %v615
    %v620 = vpack.c.bf16 %v616, %v616
    %v621 = vpack.c.bf16 %v617, %v617
    %v622 = vpack.c.bf16 %v618, %v618
    %v623 = vld [vmem:[#allocation2 + $0x80] sm:$0xf]
    %v624 = vld [vmem:[#allocation2 + $0x84] sm:$0xf]
    %v625 = vld [vmem:[#allocation2 + $0x88] sm:$0xf]
    %v626 = vld [vmem:[#allocation2 + $0x8c] sm:$0xf]
    %v627 = vunpack.c.l.bf16 %v623
    %v628 = vunpack.c.l.bf16 %v624
    %v629 = vunpack.c.l.bf16 %v625
    %v630 = vunpack.c.l.bf16 %v626
    %632 = vset.pattern.permute.xlu0 64
    %633 = vperm.xlu0 %632, %v627
    %v634 = vpop.permute.xlu0 %633
    %637 = vset.pattern.permute.xlu0 64
    %638 = vperm.xlu0 %637, %v628
    %v639 = vpop.permute.xlu0 %638
    %642 = vset.pattern.permute.xlu0 64
    %643 = vperm.xlu0 %642, %v629
    %v644 = vpop.permute.xlu0 %643
    %647 = vset.pattern.permute.xlu0 64
    %648 = vperm.xlu0 %647, %v630
    %v649 = vpop.permute.xlu0 %648
    %v655 = vunpack.c.l.b16 %v623
    %v656 = vunpack.c.l.b16 %v624
    %v657 = vunpack.c.l.b16 %v625
    %v658 = vunpack.c.l.b16 %v626
    %v659 = vpack.c.b16 %v656, %v655
    %v660 = vpack.c.b16 %v658, %v657
    %v665 = vunpack.c.l.b16 %v619
    %v666 = vunpack.c.l.b16 %v620
    %v667 = vunpack.c.l.b16 %v621
    %v668 = vunpack.c.l.b16 %v622
    %v669 = vpack.c.b16 %v666, %v665
    %v670 = vpack.c.b16 %v668, %v667
    %v674 = vsel %vm185, %v659, 0
    %v677 = vsel %vm185, %v660, 0
    %679 = vmatpush.bf16.msra.mxu0 0
    %680 = vmatpush.bf16.msra.mxu0 0
    %681 = vmatpush.bf16.msra.mxu0 0
    %682 = vmatpush.bf16.msra.mxu0 0
    %683 = vmatpush.bf16.msra.mxu0 0
    %684 = vmatpush.bf16.msra.mxu0 0
    %685 = vmatpush.bf16.msra.mxu0 %v670
    %686 = vmatpush.bf16.msra.mxu0 %v669
    %687 = vmatmul.bf16.gmra.mxu0 %v674
    %v688 = vpop.f32.mrf.mxu0
    %v689 = vadd.f32 %v634, %v688
    %v690 = vpop.f32.mrf.mxu0
    %v691 = vadd.f32 %v639, %v690
    %692 = vmatmul.bf16.gmra.mxu0 %v677
    %v693 = vpop.f32.mrf.mxu0
    %v694 = vadd.f32 %v644, %v693
    %v695 = vpop.f32.mrf.mxu0
    %v696 = vadd.f32 %v649, %v695
    %697 = vdwg.mxu0
    %v698 = vmax.f32 %v689, 0.0
    %v699 = vmax.f32 %v691, 0.0
    %v700 = vmax.f32 %v694, 0.0
    %v701 = vmax.f32 %v696, 0.0
    %v702 = vpack.c.bf16 %v699, %v698
    %v703 = vpack.c.bf16 %v701, %v700
    %v704 = vld [vmem:[#allocation2 + $0x90] sm:$0xf]
    %v705 = vld [vmem:[#allocation2 + $0x94] sm:$0xf]
    %v706 = vld [vmem:[#allocation2 + $0x98] sm:$0xf]
    %v707 = vld [vmem:[#allocation2 + $0x9c] sm:$0xf]
    %v708 = vunpack.c.l.bf16 %v704
    %v709 = vunpack.c.l.bf16 %v705
    %v710 = vunpack.c.l.bf16 %v706
    %v711 = vunpack.c.l.bf16 %v707
    %713 = vset.pattern.permute.xlu0 64
    %714 = vperm.xlu0 %713, %v708
    %v715 = vpop.permute.xlu0 %714
    %718 = vset.pattern.permute.xlu0 64
    %719 = vperm.xlu0 %718, %v709
    %v720 = vpop.permute.xlu0 %719
    %723 = vset.pattern.permute.xlu0 64
    %724 = vperm.xlu0 %723, %v710
    %v725 = vpop.permute.xlu0 %724
    %728 = vset.pattern.permute.xlu0 64
    %729 = vperm.xlu0 %728, %v711
    %v730 = vpop.permute.xlu0 %729
    %v736 = vunpack.c.l.b16 %v704
    %v737 = vunpack.c.l.b16 %v705
    %v738 = vunpack.c.l.b16 %v706
    %v739 = vunpack.c.l.b16 %v707
    %v740 = vpack.c.b16 %v737, %v736
    %v741 = vpack.c.b16 %v739, %v738
    %v743 = vsel %vm185, %v740, 0
    %v746 = vsel %vm185, %v741, 0
    %748 = vmatpush.bf16.msra.mxu0 0
    %749 = vmatpush.bf16.msra.mxu0 0
    %750 = vmatpush.bf16.msra.mxu0 0
    %751 = vmatpush.bf16.msra.mxu0 0
    %752 = vmatpush.bf16.msra.mxu0 0
    %753 = vmatpush.bf16.msra.mxu0 0
    %754 = vmatpush.bf16.msra.mxu0 %v703
    %755 = vmatpush.bf16.msra.mxu0 %v702
    %756 = vmatmul.bf16.gmra.mxu0 %v743
    %v757 = vpop.f32.mrf.mxu0
    %v758 = vadd.f32 %v715, %v757
    %v759 = vpop.f32.mrf.mxu0
    %v760 = vadd.f32 %v720, %v759
    %761 = vmatmul.bf16.gmra.mxu0 %v746
    %v762 = vpop.f32.mrf.mxu0
    %v763 = vadd.f32 %v725, %v762
    %v764 = vpop.f32.mrf.mxu0
    %v765 = vadd.f32 %v730, %v764
    %766 = vdwg.mxu0
    %v767 = vunpack.c.l.bf16 %v619
    %v768 = vunpack.c.l.bf16 %v620
    %v769 = vunpack.c.l.bf16 %v621
    %v770 = vunpack.c.l.bf16 %v622
    %v771 = vadd.f32 %v758, %v767
    %v772 = vadd.f32 %v760, %v768
    %v773 = vadd.f32 %v763, %v769
    %v774 = vadd.f32 %v765, %v770
    %v775 = vpack.c.bf16 %v772, %v771
    %v776 = vpack.c.bf16 %v774, %v773
    %v777 = vld [vmem:[#allocation2 + $0xa0] sm:$0xf]
    %v778 = vld [vmem:[#allocation2 + $0xa4] sm:$0x3]
    %v779 = vunpack.c.l.bf16 %v777
    %v780 = vunpack.c.l.bf16 %v778
    %782 = vset.pattern.permute.xlu0 64
    %783 = vperm.xlu0 %782, %v779
    %v784 = vpop.permute.xlu0 %783
    %787 = vset.pattern.permute.xlu0 64
    %788 = vperm.xlu0 %787, %v780
    %v789 = vpop.permute.xlu0 %788
    %v793 = vunpack.c.l.b16 %v777
    %v794 = vunpack.c.l.b16 %v778
    %v795 = vpack.c.b16 %v794, %v793
    %v797 = vsel %vm185, %v795, 0
    %799 = vmatpush.bf16.msra.mxu0 0
    %800 = vmatpush.bf16.msra.mxu0 0
    %801 = vmatpush.bf16.msra.mxu0 0
    %802 = vmatpush.bf16.msra.mxu0 0
    %803 = vmatpush.bf16.msra.mxu0 0
    %804 = vmatpush.bf16.msra.mxu0 0
    %805 = vmatpush.bf16.msra.mxu0 %v776
    %806 = vmatpush.bf16.msra.mxu0 %v775
    %807 = vmatmul.bf16.gmra.mxu0 %v797
    %v808 = vpop.f32.mrf.mxu0
    %v809 = vadd.f32 %v784, %v808
    %v810 = vpop.f32.mrf.mxu0
    %v811 = vadd.f32 %v789, %v810
    %812 = vdwg.mxu0
    %813 = vst [vmem:[%s2] sm:$0xff] %v809
    %814 = vst [vmem:[%s2 + $0x8] sm:$0xf] %v811
    // Predicated region
    $region14: #{ts3d_forward.1} parent=1 // pred_check
      _
    $region15: #{ts3d_forward.1} parent=1 // pred_check_branch
      %816 = sbr.rel (0) target = $region17
    $region16: #{ts3d_forward.1} parent=1 // pred_region
      _
    $region17: #{ts3d_forward.1} parent=1 // pred_fallthru
      _
    // Predicated region
    $region18: #{ts3d_forward.1} parent=1 // pred_check
      _
    $region19: #{ts3d_forward.1} parent=1 // pred_check_branch
      %818 = sbr.rel (0) target = $region21
    $region20: #{ts3d_forward.1} parent=1 // pred_region
      _
    $region21: #{ts3d_forward.1} parent=1 // pred_fallthru
      _
    %819 = vsyncpa [#allocation3], 1

</llo_original>
